<compile_context>
chip_gen: v7x
topology: tpu7x:2x2x1
jax: 0.10.0
libtpu: 0.0.40
codegen_flags: <defaults>
</compile_context>

<pallas_src>
import functools

import jax
import jax.numpy as jnp
from jax.experimental import pallas as pl
from jax.experimental.pallas import tpu as pltpu


def _round_up(v, m):
    return ((v + m - 1) // m) * m


def hgnn_conv_kernel(g_ref, x_ref, w_ref, out_ref, acc_ref, *, tk, x_resident):
    k = pl.program_id(1)

    @pl.when(k == 0)
    def _init():
        acc_ref[...] = jnp.zeros_like(acc_ref)

    if x_resident:
        # x lives fully in VMEM (DMA'd once); take the k-th (tk, in_p) slab.
        start = pl.multiple_of(k * tk, 128)
        xs = x_ref[pl.ds(start, tk), :]
    else:
        xs = x_ref[...]

    # Partial (G @ [x | 1]) accumulation on the MXU, f32 accumulator in VMEM.
    acc_ref[...] += jnp.dot(g_ref[...], xs, preferred_element_type=jnp.float32)

    @pl.when(k == pl.num_programs(1) - 1)
    def _finalize():
        # (G @ [x|1]) @ [[W],[b]] -- tiny f32 matmul, bias folded into W row.
        out_ref[...] = jnp.dot(
            acc_ref[...], w_ref[...], preferred_element_type=jnp.float32
        ).astype(out_ref.dtype)


@functools.partial(jax.jit, static_argnames=("tile_m", "tile_k"))
def hgnn_conv(x, w, b, g, *, tile_m=1024, tile_k=1024):
    """HGNNConv forward: G @ (x @ w + b).

    x: [N, in_ft] f32, w: [in_ft, out_ft] f32 (pre-transposed torch weight),
    b: [out_ft] f32, g: [N, N] f32 or bf16  ->  [N, out_ft] f32.
    """
    N, in_ft = x.shape
    out_ft = w.shape[1]

    tile_m = max(128, _round_up(tile_m, 128))
    tile_k = max(128, _round_up(tile_k, 128))

    # Lane-dense feature padding; +1 lane reserved for the ones column.
    in_p = _round_up(in_ft + 1, 128)
    out_p = _round_up(out_ft, 128)

    # Row tiles: keep the 'parallel' axis >= 2 wide (v7x has 2 TensorCores).
    tm = min(tile_m, _round_up(-(-N // 2), 128))
    tk = min(tile_k, _round_up(N, 128))
    n_rows = _round_up(N, tm)
    n_cols = _round_up(N, tk)

    # G: traffic-dominant operand.  Accept bf16 directly (cast hoisted out of
    # the per-call path by the caller); pad only when the tiles don't divide N.
    g_bf = g if g.dtype == jnp.bfloat16 else g.astype(jnp.bfloat16)
    if n_rows != N or n_cols != N:
        g_bf = jnp.pad(g_bf, ((0, n_rows - N), (0, n_cols - N)))

    # x augmented with a ones column (gives rowsum(G) from the same matmul).
    x_aug = jnp.concatenate(
        [x.astype(jnp.bfloat16), jnp.ones((N, 1), jnp.bfloat16)], axis=1)
    x_p = jnp.pad(x_aug, ((0, n_cols - N), (0, in_p - (in_ft + 1))))

    # W augmented with the bias row (aligned with the ones column).  Padded
    # rows/cols are zero, so lane padding cannot pollute the result.
    w_aug = jnp.concatenate([w, b[None, :]], axis=0).astype(jnp.float32)
    w_p = jnp.pad(w_aug, ((0, in_p - (in_ft + 1)), (0, out_p - out_ft)))

    grid = (n_rows // tm, n_cols // tk)

    # Keep x fully VMEM-resident when small (the common case): DMA'd exactly
    # once instead of re-streamed for every row tile.
    x_resident = (n_cols * in_p * 2) <= (8 << 20)
    if x_resident:
        x_spec = pl.BlockSpec((n_cols, in_p), lambda i, k: (0, 0))
    else:
        x_spec = pl.BlockSpec((tk, in_p), lambda i, k: (k, 0))

    # Generation-aware VMEM budget (v7x: 64 MiB/TC, v5e/v6e: 128 MiB).
    try:
        vmem_cap = int(pltpu.get_tpu_info().vmem_capacity_bytes)
    except Exception:
        vmem_cap = 64 << 20
    vmem_limit = int(min((vmem_cap * 3) // 4, 96 << 20))

    cost = pl.CostEstimate(
        flops=2 * n_rows * n_cols * in_p + 2 * n_rows * in_p * out_p,
        transcendentals=0,
        bytes_accessed=(n_rows * n_cols * 2 + n_cols * in_p * 2
                        + in_p * out_p * 4 + n_rows * out_p * 4),
    )

    kernel = functools.partial(hgnn_conv_kernel, tk=tk, x_resident=x_resident)

    out_padded = pl.pallas_call(
        kernel,
        out_shape=jax.ShapeDtypeStruct((n_rows, out_p), jnp.float32),
        grid_spec=pltpu.PrefetchScalarGridSpec(
            num_scalar_prefetch=0,
            grid=grid,
            in_specs=[
                pl.BlockSpec((tm, tk), lambda i, k: (i, k)),        # G tile
                x_spec,                                             # [x | 1]
                pl.BlockSpec((in_p, out_p), lambda i, k: (0, 0)),   # [W ; b]
            ],
            out_specs=pl.BlockSpec((tm, out_p), lambda i, k: (i, 0)),
            scratch_shapes=[
                pltpu.VMEM((tm, in_p), jnp.float32),   # (G @ [x|1]) accumulator
            ],
        ),
        compiler_params=pltpu.CompilerParams(
            dimension_semantics=("parallel", "arbitrary"),
            vmem_limit_bytes=vmem_limit,
        ),
        cost_estimate=cost,
    )(g_bf, x_p, w_p)

    return out_padded[:N, :out_ft]


if __name__ == "__main__":
    # Small shapes consistent with HGNNConv.forward(x, G):
    #   x: [N, in_ft] node features, G: [N, N] hypergraph matrix.
    N, in_ft, out_ft = 256, 32, 64

    key = jax.random.PRNGKey(0)
    kx, kg, kw, kb = jax.random.split(key, 4)

    x = jax.random.normal(kx, (N, in_ft), dtype=jnp.float32)
    G = jax.random.normal(kg, (N, N), dtype=jnp.float32)

    # torch.nn.Linear init: U(-1/sqrt(in_ft), 1/sqrt(in_ft)).
    # Torch stores W as [out_ft, in_ft]; we keep its transpose [in_ft, out_ft].
    bound = 1.0 / jnp.sqrt(jnp.float32(in_ft))
    w = jax.random.uniform(kw, (in_ft, out_ft), dtype=jnp.float32,
                           minval=-bound, maxval=bound)
    b = jax.random.uniform(kb, (out_ft,), dtype=jnp.float32,
                           minval=-bound, maxval=bound)

    # Hoist the f32->bf16 cast of G out of the per-call path: carry G as bf16
    # and reuse it across calls (removes a full extra HBM pass over G).
    G_bf16 = jax.block_until_ready(G.astype(jnp.bfloat16))

    # tile_m/tile_k = 128 so the toy N=256 case exercises a real (2, 2) grid
    # (2 'parallel' row tiles, 2-step reduction over G columns in VMEM).
    out = hgnn_conv(x, w, b, G_bf16, tile_m=128, tile_k=128)
    out = jax.block_until_ready(out)

    # Pure-JAX f32 reference of the PyTorch forward: G @ (x @ W + b).
    ref = G @ (x @ w + b[None, :])
    assert out.shape == (N, out_ft)
    # bf16 MXU inputs with f32 accumulation: check max error relative to the
    # reference's scale.
    rel_err = jnp.max(jnp.abs(out - ref)) / (jnp.max(jnp.abs(ref)) + 1e-6)
    assert rel_err < 5e-2, f"mismatch vs reference, rel_err={rel_err}"

    print("KERNEL_OK")
</pallas_src>

<mosaic_0001>
module attributes {stable_mosaic.version = 11 : i64} {
  func.func @hgnn_conv_kernel(%arg0: i32, %arg1: i32, %arg2: memref<128x128xbf16, #tpu.memory_space<vmem>>, %arg3: memref<256x128xbf16, #tpu.memory_space<vmem>>, %arg4: memref<128x128xf32, #tpu.memory_space<vmem>>, %arg5: memref<128x128xf32, #tpu.memory_space<vmem>>, %arg6: memref<128x128xf32, #tpu.memory_space<vmem>>) attributes {dimension_semantics = [#tpu.dimension_semantics<parallel>, #tpu.dimension_semantics<arbitrary>], iteration_bounds = array<i64: 2, 2>, scalar_prefetch = 0 : i64, scratch_operands = 1 : i64, tpu.core_type = #tpu.core_type<tc>, window_params = [{transform_indices = @transform_0, window_bounds = array<i64: 128, 128>}, {pipeline_mode = #tpu.pipeline_mode<synchronous>, transform_indices = @transform_1, window_bounds = array<i64: 256, 128>}, {pipeline_mode = #tpu.pipeline_mode<synchronous>, transform_indices = @transform_2, window_bounds = array<i64: 128, 128>}, {transform_indices = @transform_3, window_bounds = array<i64: 128, 128>}]} {
    %c0_i32 = arith.constant 0 : i32
    %0 = arith.cmpi eq, %arg1, %c0_i32 : i32
    %1 = arith.extui %0 : i1 to i32
    %c0_i32_0 = arith.constant 0 : i32
    %2 = arith.cmpi ne, %1, %c0_i32_0 : i32
    scf.if %2 {
      %cst_8 = arith.constant 0.000000e+00 : f32
      %15 = vector.broadcast %cst_8 : f32 to vector<128x128xf32>
      %c0_9 = arith.constant 0 : index
      %c0_10 = arith.constant 0 : index
      %16 = vector.load %arg6[%c0_9, %c0_10] : memref<128x128xf32, #tpu.memory_space<vmem>>, vector<128x128xf32>
      tpu.vector_store %arg6[%c0_9, %c0_10], %15 {strides = array<i32>} : memref<128x128xf32, #tpu.memory_space<vmem>>, vector<128x128xf32>,
    } else {
    }
    %c128_i32 = arith.constant 128 : i32
    %3 = arith.muli %arg1, %c128_i32 : i32
    %4 = tpu.assume_multiple %3, 128 : i32
    %5 = arith.index_cast %4 : i32 to index
    %c0 = arith.constant 0 : index
    %6 = vector.load %arg3[%5, %c0] : memref<256x128xbf16, #tpu.memory_space<vmem>>, vector<128x128xbf16>
    %c0_1 = arith.constant 0 : index
    %c0_2 = arith.constant 0 : index
    %7 = vector.load %arg6[%c0_1, %c0_2] : memref<128x128xf32, #tpu.memory_space<vmem>>, vector<128x128xf32>
    %c0_3 = arith.constant 0 : index
    %c0_4 = arith.constant 0 : index
    %8 = vector.load %arg2[%c0_3, %c0_4] : memref<128x128xbf16, #tpu.memory_space<vmem>>, vector<128x128xbf16>
    %cst = arith.constant dense<0.000000e+00> : vector<128x128xf32>
    %9 = tpu.matmul %8, %6, %cst {dimension_numbers = #tpu.dot_dimension_numbers<[1], [0], [0], [1], [0, 0, 1, 1], [], []>} : vector<128x128xbf16>, vector<128x128xbf16>, vector<128x128xf32> -> vector<128x128xf32>
    %10 = arith.addf %7, %9 : vector<128x128xf32>
    %c0_5 = arith.constant 0 : index
    %c0_6 = arith.constant 0 : index
    %11 = vector.load %arg6[%c0_5, %c0_6] : memref<128x128xf32, #tpu.memory_space<vmem>>, vector<128x128xf32>
    tpu.vector_store %arg6[%c0_5, %c0_6], %10 {strides = array<i32>} : memref<128x128xf32, #tpu.memory_space<vmem>>, vector<128x128xf32>,
    %c1_i32 = arith.constant 1 : i32
    %12 = arith.cmpi eq, %arg1, %c1_i32 : i32
    %13 = arith.extui %12 : i1 to i32
    %c0_i32_7 = arith.constant 0 : i32
    %14 = arith.cmpi ne, %13, %c0_i32_7 : i32
    scf.if %14 {
      %c0_8 = arith.constant 0 : index
      %c0_9 = arith.constant 0 : index
      %15 = vector.load %arg6[%c0_8, %c0_9] : memref<128x128xf32, #tpu.memory_space<vmem>>, vector<128x128xf32>
      %c0_10 = arith.constant 0 : index
      %c0_11 = arith.constant 0 : index
      %16 = vector.load %arg4[%c0_10, %c0_11] : memref<128x128xf32, #tpu.memory_space<vmem>>, vector<128x128xf32>
      %cst_12 = arith.constant dense<0.000000e+00> : vector<128x128xf32>
      %17 = tpu.matmul %15, %16, %cst_12 {dimension_numbers = #tpu.dot_dimension_numbers<[1], [0], [0], [1], [0, 0, 1, 1], [], []>} : vector<128x128xf32>, vector<128x128xf32>, vector<128x128xf32> -> vector<128x128xf32>
      %c0_13 = arith.constant 0 : index
      %c0_14 = arith.constant 0 : index
      %18 = vector.load %arg5[%c0_13, %c0_14] : memref<128x128xf32, #tpu.memory_space<vmem>>, vector<128x128xf32>
      tpu.vector_store %arg5[%c0_13, %c0_14], %17 {strides = array<i32>} : memref<128x128xf32, #tpu.memory_space<vmem>>, vector<128x128xf32>,
    } else {
    }
    return
  }
  func.func @transform_0(%arg0: i32, %arg1: i32) -> (i32, i32) {
    %c0_i32 = arith.constant 0 : i32
    return %arg0, %arg1 : i32, i32
  }
  func.func @transform_1(%arg0: i32, %arg1: i32) -> (i32, i32) {
    %c0_i32 = arith.constant 0 : i32
    %c0_i32_0 = arith.constant 0 : i32
    %c0_i32_1 = arith.constant 0 : i32
    return %c0_i32, %c0_i32_0 : i32, i32
  }
  func.func @transform_2(%arg0: i32, %arg1: i32) -> (i32, i32) {
    %c0_i32 = arith.constant 0 : i32
    %c0_i32_0 = arith.constant 0 : i32
    %c0_i32_1 = arith.constant 0 : i32
    return %c0_i32, %c0_i32_0 : i32, i32
  }
  func.func @transform_3(%arg0: i32, %arg1: i32) -> (i32, i32) {
    %c0_i32 = arith.constant 0 : i32
    %c0_i32_0 = arith.constant 0 : i32
    return %arg0, %c0_i32 : i32, i32
  }
}

</mosaic_0001>

<llo_original>
// kernel: hgnn_conv.1
$region0: #{hgnn_conv.1}
  #allocation0 [shape = 'u32[]', space=smem, size = 0x4, offset = 0x4, fixed_abs, tag = 'smem constant byte address 0x4 - core index']
  #allocation1 [shape = 'u32[144,128]{1,0:T(1,128)}', space=vmem, size = 0x12000, scoped, tag = 'internal scratch']
  #allocation2 [shape = 'f32[128,128]{1,0:T(8,128)}', space=vmem, size = 0x10000, scoped, tag = 'scratch operand']
  %s0 = inlined_call_operand.vmem [shape: bf16[256,256], index: 0, kind: input, shape index: {}]
  %s1 = inlined_call_operand.vmem [shape: bf16[256,128], index: 1, kind: input, shape index: {}]
  %s2 = inlined_call_operand.vmem [shape: f32[128,128], index: 2, kind: input, shape index: {}]
  %s3 = inlined_call_operand.vmem [shape: f32[256,128], index: 3, kind: output, shape index: {}]
  %s4 = sld [smem:[#allocation0]]
  $region94: #{hgnn_conv.1} parent=0
    _
  %s6 = ssub.s32 1, %s4
  %s7 = scalar_select 0, %s6, %s4
  $region1: #{hgnn_conv.1} parent=0
    #allocation3 [shape = 'u8[65536]{0}', space=vmem, size = 0x10000, scoped, tag = 'input window, operand 0']
    loop: start=0, step=1, limit=6
    $region2: #{hgnn_conv.1} parent=1 // loop_pre_header
      _
    $region3: #{hgnn_conv.1} parent=1 // loop_header
      %s9 = sphi 0, %s13
      %p10 = scmp.ge.s32.totalorder %s9, 6
      %s16 = sphi 0, %s28
      %s17 = sphi 0, %s24
      %s18 = sphi 0, %s16
      %s19 = sphi 0, %s17
      %s20 = sphi 0, %s18
      %s21 = sphi 0, %s19
      %s33 = sphi 0, %s35
      %s36 = sphi 0, %s33
      %s37 = sphi 0, %s36
      %s53 = sphi 0, %s37
      %s57 = sphi 0, %s57
      %s59 = sphi 0, %s57
      %s60 = sphi 0, %s59
      %s74 = sphi 0, %s60
      %s78 = sphi 0, %s78
      %s80 = sphi 0, %s78
      %s81 = sphi 0, %s80
      %s95 = sphi 0, %s81
      %s101 = sphi 0, %s103
      %s104 = sphi 0, %s101
      %s105 = sphi 0, %s104
      %s121 = sphi 0, %s105
    $region4: #{hgnn_conv.1} parent=1 // loop_header_branch
      %12 = sbr.rel (%p10) target = $region8
    $region5: #{hgnn_conv.1} parent=1 // loop_body
      %s14 = ssub.s32 %s9, 1
      %s15 = ssub.s32 %s9, 2
      %s22 = sadd.s32 1, %s17
      %p23 = scmp.ge.s32.totalorder %s22, 2
      %s24 = scalar_select %p23, 0, %s22
      %s25 = sadd.s32 1, %s16
      %s26 = scalar_select %p23, %s25, %s16
      %p27 = scmp.ge.s32.totalorder %s26, 2
      %s28 = scalar_select %p27, 0, %s26
      %s29 = ssub.s32 %s16, %s28
      %s30 = ssub.s32 %s17, %s24
      %s31 = sor.u32 %s29, %s30
      %p32 = scmp.eq.s32.totalorder %s31, 0
      %s34 = sadd.s32 %s33, 1
      %s35 = scalar_select %p32, %s33, %s34
      %p38 = pneg %p32
      %p39 = scmp.eq.s32.totalorder %s9, 3
      %p40 = por %p38, %p39
      %p41 = scmp.ne.s32.totalorder %s33, %s36
      %p42 = scmp.eq.s32.totalorder %s9, 0
      %p43 = por %p41, %p42
      %p44 = scmp.ne.s32.totalorder %s33, %s36
      %p45 = scmp.eq.s32.totalorder %s14, 3
      %p46 = por %p44, %p45
      %p47 = scmp.ne.s32.totalorder %s36, %s37
      %p48 = scmp.eq.s32.totalorder %s14, 0
      %p49 = por %p47, %p48
      %p50 = scmp.ne.s32.totalorder %s36, %s37
      %p51 = scmp.eq.s32.totalorder %s15, 3
      %p52 = por %p50, %p51
      %p54 = scmp.ne.s32.totalorder %s37, %s53
      %p55 = scmp.eq.s32.totalorder %s15, 0
      %p56 = por %p54, %p55
      %s58 = sadd.s32 %s57, 1
      %p61 = scmp.eq.s32.totalorder %s9, 3
      %p62 = scmp.ne.s32.totalorder %s57, %s59
      %p63 = scmp.eq.s32.totalorder %s9, 0
      %p64 = por %p62, %p63
      %p65 = scmp.ne.s32.totalorder %s57, %s59
      %p66 = scmp.eq.s32.totalorder %s14, 3
      %p67 = por %p65, %p66
      %p68 = scmp.ne.s32.totalorder %s59, %s60
      %p69 = scmp.eq.s32.totalorder %s14, 0
      %p70 = por %p68, %p69
      %p71 = scmp.ne.s32.totalorder %s59, %s60
      %p72 = scmp.eq.s32.totalorder %s15, 3
      %p73 = por %p71, %p72
      %p75 = scmp.ne.s32.totalorder %s60, %s74
      %p76 = scmp.eq.s32.totalorder %s15, 0
      %p77 = por %p75, %p76
      %s79 = sadd.s32 %s78, 1
      %p82 = scmp.eq.s32.totalorder %s9, 3
      %p83 = scmp.ne.s32.totalorder %s78, %s80
      %p84 = scmp.eq.s32.totalorder %s9, 0
      %p85 = por %p83, %p84
      %p86 = scmp.ne.s32.totalorder %s78, %s80
      %p87 = scmp.eq.s32.totalorder %s14, 3
      %p88 = por %p86, %p87
      %p89 = scmp.ne.s32.totalorder %s80, %s81
      %p90 = scmp.eq.s32.totalorder %s14, 0
      %p91 = por %p89, %p90
      %p92 = scmp.ne.s32.totalorder %s80, %s81
      %p93 = scmp.eq.s32.totalorder %s15, 3
      %p94 = por %p92, %p93
      %p96 = scmp.ne.s32.totalorder %s81, %s95
      %p97 = scmp.eq.s32.totalorder %s15, 0
      %p98 = por %p96, %p97
      %s99 = ssub.s32 %s16, %s28
      %p100 = scmp.eq.s32.totalorder %s99, 0
      %s102 = sadd.s32 %s101, 1
      %s103 = scalar_select %p100, %s101, %s102
      %p106 = pneg %p100
      %p107 = scmp.eq.s32.totalorder %s9, 3
      %p108 = por %p106, %p107
      %p109 = scmp.ne.s32.totalorder %s101, %s104
      %p110 = scmp.eq.s32.totalorder %s9, 0
      %p111 = por %p109, %p110
      %p112 = scmp.ne.s32.totalorder %s101, %s104
      %p113 = scmp.eq.s32.totalorder %s14, 3
      %p114 = por %p112, %p113
      %p115 = scmp.ne.s32.totalorder %s104, %s105
      %p116 = scmp.eq.s32.totalorder %s14, 0
      %p117 = por %p115, %p116
      %p118 = scmp.ne.s32.totalorder %s104, %s105
      %p119 = scmp.eq.s32.totalorder %s15, 3
      %p120 = por %p118, %p119
      %p122 = scmp.ne.s32.totalorder %s105, %s121
      %p123 = scmp.eq.s32.totalorder %s15, 0
      %p124 = por %p122, %p123
      %p125 = scmp.le.s32.totalorder 1, %s9
      %p126 = scmp.lt.s32.totalorder %s9, 5
      %p127 = pnand %p125, %p126
      %p128 = pneg %p127
      // Predicated region
      $region9: #{hgnn_conv.1} parent=5 // pred_check
        _
      $region10: #{hgnn_conv.1} parent=5 // pred_check_branch
        %130 = sbr.rel (%p127) target = $region12
      $region11: #{hgnn_conv.1} parent=5 // pred_region
        %s131 = ssub.s32 %s9, 1
        // Predicated region
        $region13: #{hgnn_conv.1} parent=11 // pred_check
          %p132 = pneg %p70
        $region14: #{hgnn_conv.1} parent=11 // pred_check_branch
          %134 = sbr.rel (%p132) target = $region16
        $region15: #{hgnn_conv.1} parent=11 // pred_region
          _
        $region16: #{hgnn_conv.1} parent=11 // pred_fallthru
          _
        // Predicated region
        $region17: #{hgnn_conv.1} parent=11 // pred_check
          %p135 = pneg %p91
        $region18: #{hgnn_conv.1} parent=11 // pred_check_branch
          %137 = sbr.rel (%p135) target = $region20
        $region19: #{hgnn_conv.1} parent=11 // pred_region
          _
        $region20: #{hgnn_conv.1} parent=11 // pred_fallthru
          _
      $region12: #{hgnn_conv.1} parent=5 // pred_fallthru
        _
      %p138 = scmp.lt.s32.totalorder %s9, 4
      // Predicated region
      $region21: #{hgnn_conv.1} parent=5 // pred_check
        %p139 = pneg %p138
      $region22: #{hgnn_conv.1} parent=5 // pred_check_branch
        %141 = sbr.rel (%p139) target = $region24
      $region23: #{hgnn_conv.1} parent=5 // pred_region
        // Predicated region
        $region25: #{hgnn_conv.1} parent=23 // pred_check
          %p142 = pneg %p43
        $region26: #{hgnn_conv.1} parent=23 // pred_check_branch
          %144 = sbr.rel (%p142) target = $region28
        $region27: #{hgnn_conv.1} parent=23 // pred_region
          %s145 = sand.u32 %s33, 1
          %s146 = sand.u32 %s33, 1
          %s147 = smul.addr %s146, 64
          %s148 = scalar_lea.vmem [#allocation3], %s147
          %s149 = smul.u32 16, %s16
          %s150 = smul.addr %s149, 2
          %s151 = sadd.s32 %s17, %s150
          %s152 = smul.addr %s151, 4
          %s153 = scalar_lea.vmem %s0, %s152
          // Predicated region
          $region29: #{hgnn_conv.1} parent=27 // pred_check
            _
          $region30: #{hgnn_conv.1} parent=27 // pred_check_branch
            %155 = sbr.rel (0) target = $region32
          $region31: #{hgnn_conv.1} parent=27 // pred_region
            // Predicated region
            $region33: #{hgnn_conv.1} parent=31 // pred_check
              _
            $region34: #{hgnn_conv.1} parent=31 // pred_check_branch
              %157 = sbr.rel target = $region36
            $region35: #{hgnn_conv.1} parent=31 // pred_region
              // Predicated region
              $region48: #{hgnn_conv.1} parent=35 // pred_check
                _
              $region49: #{hgnn_conv.1} parent=35 // pred_check_branch
                %202 = sbr.rel (0) target = $region51
              $region50: #{hgnn_conv.1} parent=35 // pred_region
                loop: start=0, step=1, limit=1
                $region52: #{hgnn_conv.1} parent=50 // loop_pre_header
                  _
                $region53: #{hgnn_conv.1} parent=50 // loop_header
                  %s204 = sphi 0, %s208
                  %p205 = scmp.ge.s32.totalorder %s204, 1
                  %s209 = sphi %s153, %s153
                  %s210 = sphi %s148, %s148
                $region54: #{hgnn_conv.1} parent=50 // loop_header_branch
                  %207 = sbr.rel (%p205) target = $region58
                $region55: #{hgnn_conv.1} parent=50 // loop_body
                  _
                $region56: #{hgnn_conv.1} parent=50 // loop_footer
                  %s208 = sadd.s32 1, %s204
                $region57: #{hgnn_conv.1} parent=50 // loop_footer_branch
                  %203 = sbr.rel target = $region53
                $region58: #{hgnn_conv.1} parent=50 // loop_exit
                  _
                loop: start=0, step=1, limit=1
                $region59: #{hgnn_conv.1} parent=50 // loop_pre_header
                  _
                $region60: #{hgnn_conv.1} parent=50 // loop_header
                  %s213 = sphi 0, %s217
                  %p214 = scmp.ge.s32.totalorder %s213, 1
                  %s218 = sphi %s153, %s153
                  %s219 = sphi %s148, %s148
                $region61: #{hgnn_conv.1} parent=50 // loop_header_branch
                  %216 = sbr.rel (%p214) target = $region65
                $region62: #{hgnn_conv.1} parent=50 // loop_body
                  %v220 = vld [vmem:[%s218] sm:$0xf]
                  %221 = vst [vmem:[%s219] sm:$0xf] %v220
                  %v222 = vld [vmem:[%s218 + $0x8] sm:$0xf]
                  %223 = vst [vmem:[%s219 + $0x4] sm:$0xf] %v222
                  %v224 = vld [vmem:[%s218 + $0x10] sm:$0xf]
                  %225 = vst [vmem:[%s219 + $0x8] sm:$0xf] %v224
                  %v226 = vld [vmem:[%s218 + $0x18] sm:$0xf]
                  %227 = vst [vmem:[%s219 + $0xc] sm:$0xf] %v226
                  %v228 = vld [vmem:[%s218 + $0x20] sm:$0xf]
                  %229 = vst [vmem:[%s219 + $0x10] sm:$0xf] %v228
                  %v230 = vld [vmem:[%s218 + $0x28] sm:$0xf]
                  %231 = vst [vmem:[%s219 + $0x14] sm:$0xf] %v230
                  %v232 = vld [vmem:[%s218 + $0x30] sm:$0xf]
                  %233 = vst [vmem:[%s219 + $0x18] sm:$0xf] %v232
                  %v234 = vld [vmem:[%s218 + $0x38] sm:$0xf]
                  %235 = vst [vmem:[%s219 + $0x1c] sm:$0xf] %v234
                  %v236 = vld [vmem:[%s218 + $0x40] sm:$0xf]
                  %237 = vst [vmem:[%s219 + $0x20] sm:$0xf] %v236
                  %v238 = vld [vmem:[%s218 + $0x48] sm:$0xf]
                  %239 = vst [vmem:[%s219 + $0x24] sm:$0xf] %v238
                  %v240 = vld [vmem:[%s218 + $0x50] sm:$0xf]
                  %241 = vst [vmem:[%s219 + $0x28] sm:$0xf] %v240
                  %v242 = vld [vmem:[%s218 + $0x58] sm:$0xf]
                  %243 = vst [vmem:[%s219 + $0x2c] sm:$0xf] %v242
                  %v244 = vld [vmem:[%s218 + $0x60] sm:$0xf]
                  %245 = vst [vmem:[%s219 + $0x30] sm:$0xf] %v244
                  %v246 = vld [vmem:[%s218 + $0x68] sm:$0xf]
                  %247 = vst [vmem:[%s219 + $0x34] sm:$0xf] %v246
                  %v248 = vld [vmem:[%s218 + $0x70] sm:$0xf]
                  %249 = vst [vmem:[%s219 + $0x38] sm:$0xf] %v248
                  %v250 = vld [vmem:[%s218 + $0x78] sm:$0xf]
                  %251 = vst [vmem:[%s219 + $0x3c] sm:$0xf] %v250
                $region63: #{hgnn_conv.1} parent=50 // loop_footer
                  %s217 = sadd.s32 1, %s213
                $region64: #{hgnn_conv.1} parent=50 // loop_footer_branch
                  %212 = sbr.rel target = $region60
                $region65: #{hgnn_conv.1} parent=50 // loop_exit
                  _
              $region51: #{hgnn_conv.1} parent=35 // pred_fallthru
                _
            $region36: #{hgnn_conv.1} parent=31 // pred_fallthru
              _
            // Predicated region
            $region37: #{hgnn_conv.1} parent=31 // pred_check
              _
            $region38: #{hgnn_conv.1} parent=31 // pred_check_branch
              %159 = sbr.rel (0) target = $region40
            $region39: #{hgnn_conv.1} parent=31 // pred_region
              loop: start=0, step=1, limit=1
              $region41: #{hgnn_conv.1} parent=39 // loop_pre_header
                _
              $region42: #{hgnn_conv.1} parent=39 // loop_header
                %s162 = sphi 0, %s166
                %p163 = scmp.ge.s32.totalorder %s162, 1
                %s167 = sphi %s153, %s153
                %s168 = sphi %s148, %s148
              $region43: #{hgnn_conv.1} parent=39 // loop_header_branch
                %165 = sbr.rel (%p163) target = $region47
              $region44: #{hgnn_conv.1} parent=39 // loop_body
                %v169 = vld [vmem:[%s167] sm:$0xf]
                %170 = vst [vmem:[%s168] sm:$0xf] %v169
                %v171 = vld [vmem:[%s167 + $0x8] sm:$0xf]
                %172 = vst [vmem:[%s168 + $0x4] sm:$0xf] %v171
                %v173 = vld [vmem:[%s167 + $0x10] sm:$0xf]
                %174 = vst [vmem:[%s168 + $0x8] sm:$0xf] %v173
                %v175 = vld [vmem:[%s167 + $0x18] sm:$0xf]
                %176 = vst [vmem:[%s168 + $0xc] sm:$0xf] %v175
                %v177 = vld [vmem:[%s167 + $0x20] sm:$0xf]
                %178 = vst [vmem:[%s168 + $0x10] sm:$0xf] %v177
                %v179 = vld [vmem:[%s167 + $0x28] sm:$0xf]
                %180 = vst [vmem:[%s168 + $0x14] sm:$0xf] %v179
                %v181 = vld [vmem:[%s167 + $0x30] sm:$0xf]
                %182 = vst [vmem:[%s168 + $0x18] sm:$0xf] %v181
                %v183 = vld [vmem:[%s167 + $0x38] sm:$0xf]
                %184 = vst [vmem:[%s168 + $0x1c] sm:$0xf] %v183
                %v185 = vld [vmem:[%s167 + $0x40] sm:$0xf]
                %186 = vst [vmem:[%s168 + $0x20] sm:$0xf] %v185
                %v187 = vld [vmem:[%s167 + $0x48] sm:$0xf]
                %188 = vst [vmem:[%s168 + $0x24] sm:$0xf] %v187
                %v189 = vld [vmem:[%s167 + $0x50] sm:$0xf]
                %190 = vst [vmem:[%s168 + $0x28] sm:$0xf] %v189
                %v191 = vld [vmem:[%s167 + $0x58] sm:$0xf]
                %192 = vst [vmem:[%s168 + $0x2c] sm:$0xf] %v191
                %v193 = vld [vmem:[%s167 + $0x60] sm:$0xf]
                %194 = vst [vmem:[%s168 + $0x30] sm:$0xf] %v193
                %v195 = vld [vmem:[%s167 + $0x68] sm:$0xf]
                %196 = vst [vmem:[%s168 + $0x34] sm:$0xf] %v195
                %v197 = vld [vmem:[%s167 + $0x70] sm:$0xf]
                %198 = vst [vmem:[%s168 + $0x38] sm:$0xf] %v197
                %v199 = vld [vmem:[%s167 + $0x78] sm:$0xf]
                %200 = vst [vmem:[%s168 + $0x3c] sm:$0xf] %v199
              $region45: #{hgnn_conv.1} parent=39 // loop_footer
                %s166 = sadd.s32 1, %s162
              $region46: #{hgnn_conv.1} parent=39 // loop_footer_branch
                %161 = sbr.rel target = $region42
              $region47: #{hgnn_conv.1} parent=39 // loop_exit
                _
            $region40: #{hgnn_conv.1} parent=31 // pred_fallthru
              _
          $region32: #{hgnn_conv.1} parent=27 // pred_fallthru
            _
          %252 = vnop
        $region28: #{hgnn_conv.1} parent=23 // pred_fallthru
          _
      $region24: #{hgnn_conv.1} parent=5 // pred_fallthru
        _
      %p253 = scmp.le.s32.totalorder 1, %s9
      %p254 = scmp.lt.s32.totalorder %s9, 5
      %p255 = pnand %p253, %p254
      %p256 = pneg %p255
      // Predicated region
      $region66: #{hgnn_conv.1} parent=5 // pred_check
        _
      $region67: #{hgnn_conv.1} parent=5 // pred_check_branch
        %258 = sbr.rel (%p255) target = $region69
      $region68: #{hgnn_conv.1} parent=5 // pred_region
        %s259 = ssub.s32 %s9, 1
        %s260 = sand.u32 %s36, 1
        %s261 = sand.u32 %s36, 1
        %s262 = smul.addr %s261, 64
        %s263 = scalar_lea.vmem [#allocation3], %s262
        // Predicated region
        $region70: #{hgnn_conv.1} parent=68 // pred_check
          %p264 = pneg %p49
        $region71: #{hgnn_conv.1} parent=68 // pred_check_branch
          %266 = sbr.rel (%p264) target = $region73
        $region72: #{hgnn_conv.1} parent=68 // pred_region
          _
        $region73: #{hgnn_conv.1} parent=68 // pred_fallthru
          _
        %s267 = sand.u32 %s36, 1
        %s268 = sand.u32 %s36, 1
        %s269 = smul.addr %s268, 64
        %s270 = scalar_lea.vmem [#allocation3], %s269
        %p271 = pneg %p49
        %p272 = pneg %p46
        %p273 = pneg %p70
        %p274 = pneg %p67
        %p275 = pneg %p91
        %p276 = pneg %p88
        %p277 = pneg %p117
        %p278 = pneg %p114
        %s279 = smul.u32 16, %s18
        %p280 = scmp.lt.s32.totalorder %s279, 31
        %s281 = scalar_select %p280, %s279, 31
        %s282 = smul.addr %s281, 8
        %s283 = scalar_lea.vmem %s3, %s282
        %s284 = smul.u32 16, %s18
        %s285 = smul.u32 16, %s18
        %p286 = scmp.lt.s32.totalorder %s285, 31
        %s287 = scalar_select %p286, %s285, 31
        %s288 = smul.addr %s287, 8
        %s289 = scalar_lea.vmem %s3, %s288
        %s290 = smul.u32 16, %s18
        %p292 = scmp.eq.s32.totalorder %s19, 0
        // Predicated region
        $region74: #{hgnn_conv.1} parent=68 // pred_check
          %p293 = pneg %p292
        $region75: #{hgnn_conv.1} parent=68 // pred_check_branch
          %295 = sbr.rel (%p293) target = $region77
        $region76: #{hgnn_conv.1} parent=68 // pred_region
          %296 = vst [vmem:[#allocation2] sm:$0xff] 0.0
          %297 = vst [vmem:[#allocation2 + $0x8] sm:$0xff] 0.0
          %298 = vst [vmem:[#allocation2 + $0x10] sm:$0xff] 0.0
          %299 = vst [vmem:[#allocation2 + $0x18] sm:$0xff] 0.0
          %300 = vst [vmem:[#allocation2 + $0x20] sm:$0xff] 0.0
          %301 = vst [vmem:[#allocation2 + $0x28] sm:$0xff] 0.0
          %302 = vst [vmem:[#allocation2 + $0x30] sm:$0xff] 0.0
          %303 = vst [vmem:[#allocation2 + $0x38] sm:$0xff] 0.0
          %304 = vst [vmem:[#allocation2 + $0x40] sm:$0xff] 0.0
          %305 = vst [vmem:[#allocation2 + $0x48] sm:$0xff] 0.0
          %306 = vst [vmem:[#allocation2 + $0x50] sm:$0xff] 0.0
          %307 = vst [vmem:[#allocation2 + $0x58] sm:$0xff] 0.0
          %308 = vst [vmem:[#allocation2 + $0x60] sm:$0xff] 0.0
          %309 = vst [vmem:[#allocation2 + $0x68] sm:$0xff] 0.0
          %310 = vst [vmem:[#allocation2 + $0x70] sm:$0xff] 0.0
          %311 = vst [vmem:[#allocation2 + $0x78] sm:$0xff] 0.0
        $region77: #{hgnn_conv.1} parent=68 // pred_fallthru
          _
        %s312 = smul.u32 %s19, 128
        %s313 = sshra.s32 %s312, 3
        %s314 = sand.u32 %s312, 7
        %s315 = smul.addr %s313, 4
        %s316 = scalar_lea.vmem %s1, %s315
        %v317 = vld [vmem:[%s316] sm:$0xf]
        %v318 = vld [vmem:[%s316 + $0x4] sm:$0xf]
        %v319 = vld [vmem:[%s316 + $0x8] sm:$0xf]
        %v320 = vld [vmem:[%s316 + $0xc] sm:$0xf]
        %v321 = vld [vmem:[%s316 + $0x10] sm:$0xf]
        %v322 = vld [vmem:[%s316 + $0x14] sm:$0xf]
        %v323 = vld [vmem:[%s316 + $0x18] sm:$0xf]
        %v324 = vld [vmem:[%s316 + $0x1c] sm:$0xf]
        %v325 = vld [vmem:[%s316 + $0x20] sm:$0xf]
        %v326 = vld [vmem:[%s316 + $0x24] sm:$0xf]
        %v327 = vld [vmem:[%s316 + $0x28] sm:$0xf]
        %v328 = vld [vmem:[%s316 + $0x2c] sm:$0xf]
        %v329 = vld [vmem:[%s316 + $0x30] sm:$0xf]
        %v330 = vld [vmem:[%s316 + $0x34] sm:$0xf]
        %v331 = vld [vmem:[%s316 + $0x38] sm:$0xf]
        %v332 = vld [vmem:[%s316 + $0x3c] sm:$0xf]
        %v333 = vld [vmem:[#allocation2] sm:$0xff]
        %v334 = vld [vmem:[#allocation2 + $0x8] sm:$0xff]
        %v335 = vld [vmem:[#allocation2 + $0x10] sm:$0xff]
        %v336 = vld [vmem:[#allocation2 + $0x18] sm:$0xff]
        %v337 = vld [vmem:[#allocation2 + $0x20] sm:$0xff]
        %v338 = vld [vmem:[#allocation2 + $0x28] sm:$0xff]
        %v339 = vld [vmem:[#allocation2 + $0x30] sm:$0xff]
        %v340 = vld [vmem:[#allocation2 + $0x38] sm:$0xff]
        %v341 = vld [vmem:[#allocation2 + $0x40] sm:$0xff]
        %v342 = vld [vmem:[#allocation2 + $0x48] sm:$0xff]
        %v343 = vld [vmem:[#allocation2 + $0x50] sm:$0xff]
        %v344 = vld [vmem:[#allocation2 + $0x58] sm:$0xff]
        %v345 = vld [vmem:[#allocation2 + $0x60] sm:$0xff]
        %v346 = vld [vmem:[#allocation2 + $0x68] sm:$0xff]
        %v347 = vld [vmem:[#allocation2 + $0x70] sm:$0xff]
        %v348 = vld [vmem:[#allocation2 + $0x78] sm:$0xff]
        %v349 = vld [vmem:[%s263] sm:$0xf]
        %v350 = vld [vmem:[%s263 + $0x4] sm:$0xf]
        %v351 = vld [vmem:[%s263 + $0x8] sm:$0xf]
        %v352 = vld [vmem:[%s263 + $0xc] sm:$0xf]
        %v353 = vld [vmem:[%s263 + $0x10] sm:$0xf]
        %v354 = vld [vmem:[%s263 + $0x14] sm:$0xf]
        %v355 = vld [vmem:[%s263 + $0x18] sm:$0xf]
        %v356 = vld [vmem:[%s263 + $0x1c] sm:$0xf]
        %v357 = vld [vmem:[%s263 + $0x20] sm:$0xf]
        %v358 = vld [vmem:[%s263 + $0x24] sm:$0xf]
        %v359 = vld [vmem:[%s263 + $0x28] sm:$0xf]
        %v360 = vld [vmem:[%s263 + $0x2c] sm:$0xf]
        %v361 = vld [vmem:[%s263 + $0x30] sm:$0xf]
        %v362 = vld [vmem:[%s263 + $0x34] sm:$0xf]
        %v363 = vld [vmem:[%s263 + $0x38] sm:$0xf]
        %v364 = vld [vmem:[%s263 + $0x3c] sm:$0xf]
        %v381 = vunpack.c.l.b16 %v349
        %v382 = vunpack.c.l.b16 %v350
        %v383 = vunpack.c.l.b16 %v351
        %v384 = vunpack.c.l.b16 %v352
        %v385 = vunpack.c.l.b16 %v353
        %v386 = vunpack.c.l.b16 %v354
        %v387 = vunpack.c.l.b16 %v355
        %v388 = vunpack.c.l.b16 %v356
        %v389 = vunpack.c.l.b16 %v357
        %v390 = vunpack.c.l.b16 %v358
        %v391 = vunpack.c.l.b16 %v359
        %v392 = vunpack.c.l.b16 %v360
        %v393 = vunpack.c.l.b16 %v361
        %v394 = vunpack.c.l.b16 %v362
        %v395 = vunpack.c.l.b16 %v363
        %v396 = vunpack.c.l.b16 %v364
        %v397 = vpack.c.b16 %v382, %v381
        %v398 = vpack.c.b16 %v384, %v383
        %v399 = vpack.c.b16 %v386, %v385
        %v400 = vpack.c.b16 %v388, %v387
        %v401 = vpack.c.b16 %v390, %v389
        %v402 = vpack.c.b16 %v392, %v391
        %v403 = vpack.c.b16 %v394, %v393
        %v404 = vpack.c.b16 %v396, %v395
        %v429 = vunpack.c.l.b16 %v317
        %v430 = vunpack.c.l.b16 %v318
        %v431 = vunpack.c.l.b16 %v319
        %v432 = vunpack.c.l.b16 %v320
        %v433 = vunpack.c.l.b16 %v321
        %v434 = vunpack.c.l.b16 %v322
        %v435 = vunpack.c.l.b16 %v323
        %v436 = vunpack.c.l.b16 %v324
        %v437 = vunpack.c.l.b16 %v325
        %v438 = vunpack.c.l.b16 %v326
        %v439 = vunpack.c.l.b16 %v327
        %v440 = vunpack.c.l.b16 %v328
        %v441 = vunpack.c.l.b16 %v329
        %v442 = vunpack.c.l.b16 %v330
        %v443 = vunpack.c.l.b16 %v331
        %v444 = vunpack.c.l.b16 %v332
        %v445 = vpack.c.b16 %v430, %v429
        %v446 = vpack.c.b16 %v432, %v431
        %v447 = vpack.c.b16 %v434, %v433
        %v448 = vpack.c.b16 %v436, %v435
        %v449 = vpack.c.b16 %v438, %v437
        %v450 = vpack.c.b16 %v440, %v439
        %v451 = vpack.c.b16 %v442, %v441
        %v452 = vpack.c.b16 %v444, %v443
        %461 = vmatprep.subr.bf16.mxu0 0
        %462 = vmatpush1.bf16.msra.mxu0 %v445
        %463 = vmatprep.subr.bf16.mxu0 0
        %464 = vmatpush1.bf16.msra.mxu0 %v446
        %465 = vmatprep.subr.bf16.mxu0 0
        %466 = vmatpush1.bf16.msra.mxu0 %v447
        %467 = vmatprep.subr.bf16.mxu0 0
        %468 = vmatpush1.bf16.msra.mxu0 %v448
        %469 = vmatprep.subr.bf16.mxu0 0
        %470 = vmatpush1.bf16.msra.mxu0 %v449
        %471 = vmatprep.subr.bf16.mxu0 0
        %472 = vmatpush1.bf16.msra.mxu0 %v450
        %473 = vmatprep.subr.bf16.mxu0 0
        %474 = vmatpush1.bf16.msra.mxu0 %v451
        %475 = vmatprep.subr.bf16.mxu0 0
        %476 = vmatpush1.bf16.msra.mxu0 %v452
        %477 = vmatprep.subr.bf16.mxu0 0
        %478 = vmatpush1.bf16.msra.mxu0 0
        %479 = vmatprep.subr.bf16.mxu0 0
        %480 = vmatpush1.bf16.msra.mxu0 0
        %481 = vmatprep.subr.bf16.mxu0 0
        %482 = vmatpush1.bf16.msra.mxu0 0
        %483 = vmatprep.subr.bf16.mxu0 0
        %484 = vmatpush1.bf16.msra.mxu0 0
        %485 = vmatprep.subr.bf16.mxu0 0
        %486 = vmatpush1.bf16.msra.mxu0 0
        %487 = vmatprep.subr.bf16.mxu0 0
        %488 = vmatpush1.bf16.msra.mxu0 0
        %489 = vmatprep.subr.bf16.mxu0 0
        %490 = vmatpush1.bf16.msra.mxu0 0
        %491 = vmatprep.subr.bf16.mxu0 0
        %492 = vmatpush1.bf16.msra.mxu0 0
        %493 = vmatprep.mubr.bf16.mxu0 0
        %494 = vmatmul.mubr.bf16.gmra.mrb[0].mxu0 %v397
        %v495 = vpop.f32.mrb[0].mxu0
        %v496 = vadd.f32 0.0, %v495
        %v497 = vpop.f32.mrb[0].mxu0
        %v498 = vpop.f32.mrb[0].mxu0
        %v499 = vadd.f32 0.0, %v498
        %v500 = vpop.f32.mrb[0].mxu0
        %501 = vmatprep.mubr.bf16.mxu0 0
        %502 = vmatmul.mubr.bf16.gmra.mrb[0].mxu0 %v398
        %v503 = vpop.f32.mrb[0].mxu0
        %v504 = vadd.f32 0.0, %v503
        %v505 = vpop.f32.mrb[0].mxu0
        %v506 = vpop.f32.mrb[0].mxu0
        %v507 = vadd.f32 0.0, %v506
        %v508 = vpop.f32.mrb[0].mxu0
        %509 = vmatprep.mubr.bf16.mxu0 0
        %510 = vmatmul.mubr.bf16.gmra.mrb[0].mxu0 %v399
        %v511 = vpop.f32.mrb[0].mxu0
        %v512 = vadd.f32 0.0, %v511
        %v513 = vpop.f32.mrb[0].mxu0
        %v514 = vpop.f32.mrb[0].mxu0
        %v515 = vadd.f32 0.0, %v514
        %v516 = vpop.f32.mrb[0].mxu0
        %517 = vmatprep.mubr.bf16.mxu0 0
        %518 = vmatmul.mubr.bf16.gmra.mrb[0].mxu0 %v400
        %v519 = vpop.f32.mrb[0].mxu0
        %v520 = vadd.f32 0.0, %v519
        %v521 = vpop.f32.mrb[0].mxu0
        %v522 = vpop.f32.mrb[0].mxu0
        %v523 = vadd.f32 0.0, %v522
        %v524 = vpop.f32.mrb[0].mxu0
        %525 = vmatprep.mubr.bf16.mxu0 0
        %526 = vmatmul.mubr.bf16.gmra.mrb[0].mxu0 %v401
        %v527 = vpop.f32.mrb[0].mxu0
        %v528 = vadd.f32 0.0, %v527
        %v529 = vpop.f32.mrb[0].mxu0
        %v530 = vpop.f32.mrb[0].mxu0
        %v531 = vadd.f32 0.0, %v530
        %v532 = vpop.f32.mrb[0].mxu0
        %533 = vmatprep.mubr.bf16.mxu0 0
        %534 = vmatmul.mubr.bf16.gmra.mrb[0].mxu0 %v402
        %v535 = vpop.f32.mrb[0].mxu0
        %v536 = vadd.f32 0.0, %v535
        %v537 = vpop.f32.mrb[0].mxu0
        %v538 = vpop.f32.mrb[0].mxu0
        %v539 = vadd.f32 0.0, %v538
        %v540 = vpop.f32.mrb[0].mxu0
        %541 = vmatprep.mubr.bf16.mxu0 0
        %542 = vmatmul.mubr.bf16.gmra.mrb[0].mxu0 %v403
        %v543 = vpop.f32.mrb[0].mxu0
        %v544 = vadd.f32 0.0, %v543
        %v545 = vpop.f32.mrb[0].mxu0
        %v546 = vpop.f32.mrb[0].mxu0
        %v547 = vadd.f32 0.0, %v546
        %v548 = vpop.f32.mrb[0].mxu0
        %549 = vmatprep.mubr.bf16.mxu0 0
        %550 = vmatmul.mubr.bf16.gmra.mrb[0].mxu0 %v404
        %v551 = vpop.f32.mrb[0].mxu0
        %v552 = vadd.f32 0.0, %v551
        %v553 = vpop.f32.mrb[0].mxu0
        %v554 = vpop.f32.mrb[0].mxu0
        %v555 = vadd.f32 0.0, %v554
        %v556 = vpop.f32.mrb[0].mxu0
        %557 = vdwg.mxu0
        %v558 = vadd.f32 %v333, %v496
        %v559 = vadd.f32 %v334, %v499
        %v560 = vadd.f32 %v335, %v504
        %v561 = vadd.f32 %v336, %v507
        %v562 = vadd.f32 %v337, %v512
        %v563 = vadd.f32 %v338, %v515
        %v564 = vadd.f32 %v339, %v520
        %v565 = vadd.f32 %v340, %v523
        %v566 = vadd.f32 %v341, %v528
        %v567 = vadd.f32 %v342, %v531
        %v568 = vadd.f32 %v343, %v536
        %v569 = vadd.f32 %v344, %v539
        %v570 = vadd.f32 %v345, %v544
        %v571 = vadd.f32 %v346, %v547
        %v572 = vadd.f32 %v347, %v552
        %v573 = vadd.f32 %v348, %v555
        %574 = vst [vmem:[#allocation2] sm:$0xff] %v558
        %575 = vst [vmem:[#allocation2 + $0x8] sm:$0xff] %v559
        %576 = vst [vmem:[#allocation2 + $0x10] sm:$0xff] %v560
        %577 = vst [vmem:[#allocation2 + $0x18] sm:$0xff] %v561
        %578 = vst [vmem:[#allocation2 + $0x20] sm:$0xff] %v562
        %579 = vst [vmem:[#allocation2 + $0x28] sm:$0xff] %v563
        %580 = vst [vmem:[#allocation2 + $0x30] sm:$0xff] %v564
        %581 = vst [vmem:[#allocation2 + $0x38] sm:$0xff] %v565
        %582 = vst [vmem:[#allocation2 + $0x40] sm:$0xff] %v566
        %583 = vst [vmem:[#allocation2 + $0x48] sm:$0xff] %v567
        %584 = vst [vmem:[#allocation2 + $0x50] sm:$0xff] %v568
        %585 = vst [vmem:[#allocation2 + $0x58] sm:$0xff] %v569
        %586 = vst [vmem:[#allocation2 + $0x60] sm:$0xff] %v570
        %587 = vst [vmem:[#allocation2 + $0x68] sm:$0xff] %v571
        %588 = vst [vmem:[#allocation2 + $0x70] sm:$0xff] %v572
        %589 = vst [vmem:[#allocation2 + $0x78] sm:$0xff] %v573
        %p590 = scmp.eq.s32.totalorder %s19, 1
        // Predicated region
        $region78: #{hgnn_conv.1} parent=68 // pred_check
          %p591 = pneg %p590
        $region79: #{hgnn_conv.1} parent=68 // pred_check_branch
          %593 = sbr.rel (%p591) target = $region81
        $region80: #{hgnn_conv.1} parent=68 // pred_region
          %v594 = vld [vmem:[#allocation2] sm:$0xff]
          %v595 = vld [vmem:[#allocation2 + $0x8] sm:$0xff]
          %v596 = vld [vmem:[#allocation2 + $0x10] sm:$0xff]
          %v597 = vld [vmem:[#allocation2 + $0x18] sm:$0xff]
          %v598 = vld [vmem:[#allocation2 + $0x20] sm:$0xff]
          %v599 = vld [vmem:[#allocation2 + $0x28] sm:$0xff]
          %v600 = vld [vmem:[#allocation2 + $0x30] sm:$0xff]
          %v601 = vld [vmem:[#allocation2 + $0x38] sm:$0xff]
          %v602 = vld [vmem:[#allocation2 + $0x40] sm:$0xff]
          %v603 = vld [vmem:[#allocation2 + $0x48] sm:$0xff]
          %v604 = vld [vmem:[#allocation2 + $0x50] sm:$0xff]
          %v605 = vld [vmem:[#allocation2 + $0x58] sm:$0xff]
          %v606 = vld [vmem:[#allocation2 + $0x60] sm:$0xff]
          %v607 = vld [vmem:[#allocation2 + $0x68] sm:$0xff]
          %v608 = vld [vmem:[#allocation2 + $0x70] sm:$0xff]
          %v609 = vld [vmem:[#allocation2 + $0x78] sm:$0xff]
          %v610 = vld [vmem:[%s2] sm:$0xff]
          %v611 = vld [vmem:[%s2 + $0x8] sm:$0xff]
          %v612 = vld [vmem:[%s2 + $0x10] sm:$0xff]
          %v613 = vld [vmem:[%s2 + $0x18] sm:$0xff]
          %v614 = vld [vmem:[%s2 + $0x20] sm:$0xff]
          %v615 = vld [vmem:[%s2 + $0x28] sm:$0xff]
          %v616 = vld [vmem:[%s2 + $0x30] sm:$0xff]
          %v617 = vld [vmem:[%s2 + $0x38] sm:$0xff]
          %v618 = vld [vmem:[%s2 + $0x40] sm:$0xff]
          %v619 = vld [vmem:[%s2 + $0x48] sm:$0xff]
          %v620 = vld [vmem:[%s2 + $0x50] sm:$0xff]
          %v621 = vld [vmem:[%s2 + $0x58] sm:$0xff]
          %v622 = vld [vmem:[%s2 + $0x60] sm:$0xff]
          %v623 = vld [vmem:[%s2 + $0x68] sm:$0xff]
          %v624 = vld [vmem:[%s2 + $0x70] sm:$0xff]
          %v625 = vld [vmem:[%s2 + $0x78] sm:$0xff]
          %626 = vmatprep.subr.mxu0 0.0
          %627 = vmatpush1.msra.mxu0 %v610
          %628 = vmatprep.subr.mxu0 0.0
          %629 = vmatpush1.msra.mxu0 %v611
          %630 = vmatprep.subr.mxu0 0.0
          %631 = vmatpush1.msra.mxu0 %v612
          %632 = vmatprep.subr.mxu0 0.0
          %633 = vmatpush1.msra.mxu0 %v613
          %634 = vmatprep.subr.mxu0 0.0
          %635 = vmatpush1.msra.mxu0 %v614
          %636 = vmatprep.subr.mxu0 0.0
          %637 = vmatpush1.msra.mxu0 %v615
          %638 = vmatprep.subr.mxu0 0.0
          %639 = vmatpush1.msra.mxu0 %v616
          %640 = vmatprep.subr.mxu0 0.0
          %641 = vmatpush1.msra.mxu0 %v617
          %642 = vmatprep.subr.mxu0 0.0
          %643 = vmatpush1.msra.mxu0 %v618
          %644 = vmatprep.subr.mxu0 0.0
          %645 = vmatpush1.msra.mxu0 %v619
          %646 = vmatprep.subr.mxu0 0.0
          %647 = vmatpush1.msra.mxu0 %v620
          %648 = vmatprep.subr.mxu0 0.0
          %649 = vmatpush1.msra.mxu0 %v621
          %650 = vmatprep.subr.mxu0 0.0
          %651 = vmatpush1.msra.mxu0 %v622
          %652 = vmatprep.subr.mxu0 0.0
          %653 = vmatpush1.msra.mxu0 %v623
          %654 = vmatprep.subr.mxu0 0.0
          %655 = vmatpush1.msra.mxu0 %v624
          %656 = vmatprep.subr.mxu0 0.0
          %657 = vmatpush1.msra.mxu0 %v625
          %658 = vmatprep.subr.mxu0 0.0
          %659 = vmatpush1.msra.mxu0 0.0
          %660 = vmatprep.subr.mxu0 0.0
          %661 = vmatpush1.msra.mxu0 0.0
          %662 = vmatprep.subr.mxu0 0.0
          %663 = vmatpush1.msra.mxu0 0.0
          %664 = vmatprep.subr.mxu0 0.0
          %665 = vmatpush1.msra.mxu0 0.0
          %666 = vmatprep.subr.mxu0 0.0
          %667 = vmatpush1.msra.mxu0 0.0
          %668 = vmatprep.subr.mxu0 0.0
          %669 = vmatpush1.msra.mxu0 0.0
          %670 = vmatprep.subr.mxu0 0.0
          %671 = vmatpush1.msra.mxu0 0.0
          %672 = vmatprep.subr.mxu0 0.0
          %673 = vmatpush1.msra.mxu0 0.0
          %674 = vmatprep.subr.mxu0 0.0
          %675 = vmatpush1.msra.mxu0 0.0
          %676 = vmatprep.subr.mxu0 0.0
          %677 = vmatpush1.msra.mxu0 0.0
          %678 = vmatprep.subr.mxu0 0.0
          %679 = vmatpush1.msra.mxu0 0.0
          %680 = vmatprep.subr.mxu0 0.0
          %681 = vmatpush1.msra.mxu0 0.0
          %682 = vmatprep.subr.mxu0 0.0
          %683 = vmatpush1.msra.mxu0 0.0
          %684 = vmatprep.subr.mxu0 0.0
          %685 = vmatpush1.msra.mxu0 0.0
          %686 = vmatprep.subr.mxu0 0.0
          %687 = vmatpush1.msra.mxu0 0.0
          %688 = vmatprep.subr.mxu0 0.0
          %689 = vmatpush1.msra.mxu0 0.0
          %690 = vmatprep.mubr.f32.mxu0 0.0
          %691 = vmatmul.mubr.f32.gmra.mrb[0].mxu0 %v594
          %v692 = vpop.f32.mrb[0].mxu0
          %v693 = vadd.f32 0.0, %v692
          %v694 = vpop.f32.mrb[0].mxu0
          %695 = vmatprep.mubr.f32.mxu0 0.0
          %696 = vmatmul.mubr.f32.gmra.mrb[0].mxu0 %v595
          %v697 = vpop.f32.mrb[0].mxu0
          %v698 = vadd.f32 0.0, %v697
          %v699 = vpop.f32.mrb[0].mxu0
          %700 = vmatprep.mubr.f32.mxu0 0.0
          %701 = vmatmul.mubr.f32.gmra.mrb[0].mxu0 %v596
          %v702 = vpop.f32.mrb[0].mxu0
          %v703 = vadd.f32 0.0, %v702
          %v704 = vpop.f32.mrb[0].mxu0
          %705 = vmatprep.mubr.f32.mxu0 0.0
          %706 = vmatmul.mubr.f32.gmra.mrb[0].mxu0 %v597
          %v707 = vpop.f32.mrb[0].mxu0
          %v708 = vadd.f32 0.0, %v707
          %v709 = vpop.f32.mrb[0].mxu0
          %710 = vmatprep.mubr.f32.mxu0 0.0
          %711 = vmatmul.mubr.f32.gmra.mrb[0].mxu0 %v598
          %v712 = vpop.f32.mrb[0].mxu0
          %v713 = vadd.f32 0.0, %v712
          %v714 = vpop.f32.mrb[0].mxu0
          %715 = vmatprep.mubr.f32.mxu0 0.0
          %716 = vmatmul.mubr.f32.gmra.mrb[0].mxu0 %v599
          %v717 = vpop.f32.mrb[0].mxu0
          %v718 = vadd.f32 0.0, %v717
          %v719 = vpop.f32.mrb[0].mxu0
          %720 = vmatprep.mubr.f32.mxu0 0.0
          %721 = vmatmul.mubr.f32.gmra.mrb[0].mxu0 %v600
          %v722 = vpop.f32.mrb[0].mxu0
          %v723 = vadd.f32 0.0, %v722
          %v724 = vpop.f32.mrb[0].mxu0
          %725 = vmatprep.mubr.f32.mxu0 0.0
          %726 = vmatmul.mubr.f32.gmra.mrb[0].mxu0 %v601
          %v727 = vpop.f32.mrb[0].mxu0
          %v728 = vadd.f32 0.0, %v727
          %v729 = vpop.f32.mrb[0].mxu0
          %730 = vmatprep.mubr.f32.mxu0 0.0
          %731 = vmatmul.mubr.f32.gmra.mrb[0].mxu0 %v602
          %v732 = vpop.f32.mrb[0].mxu0
          %v733 = vadd.f32 0.0, %v732
          %v734 = vpop.f32.mrb[0].mxu0
          %735 = vmatprep.mubr.f32.mxu0 0.0
          %736 = vmatmul.mubr.f32.gmra.mrb[0].mxu0 %v603
          %v737 = vpop.f32.mrb[0].mxu0
          %v738 = vadd.f32 0.0, %v737
          %v739 = vpop.f32.mrb[0].mxu0
          %740 = vmatprep.mubr.f32.mxu0 0.0
          %741 = vmatmul.mubr.f32.gmra.mrb[0].mxu0 %v604
          %v742 = vpop.f32.mrb[0].mxu0
          %v743 = vadd.f32 0.0, %v742
          %v744 = vpop.f32.mrb[0].mxu0
          %745 = vmatprep.mubr.f32.mxu0 0.0
          %746 = vmatmul.mubr.f32.gmra.mrb[0].mxu0 %v605
          %v747 = vpop.f32.mrb[0].mxu0
          %v748 = vadd.f32 0.0, %v747
          %v749 = vpop.f32.mrb[0].mxu0
          %750 = vmatprep.mubr.f32.mxu0 0.0
          %751 = vmatmul.mubr.f32.gmra.mrb[0].mxu0 %v606
          %v752 = vpop.f32.mrb[0].mxu0
          %v753 = vadd.f32 0.0, %v752
          %v754 = vpop.f32.mrb[0].mxu0
          %755 = vmatprep.mubr.f32.mxu0 0.0
          %756 = vmatmul.mubr.f32.gmra.mrb[0].mxu0 %v607
          %v757 = vpop.f32.mrb[0].mxu0
          %v758 = vadd.f32 0.0, %v757
          %v759 = vpop.f32.mrb[0].mxu0
          %760 = vmatprep.mubr.f32.mxu0 0.0
          %761 = vmatmul.mubr.f32.gmra.mrb[0].mxu0 %v608
          %v762 = vpop.f32.mrb[0].mxu0
          %v763 = vadd.f32 0.0, %v762
          %v764 = vpop.f32.mrb[0].mxu0
          %765 = vmatprep.mubr.f32.mxu0 0.0
          %766 = vmatmul.mubr.f32.gmra.mrb[0].mxu0 %v609
          %v767 = vpop.f32.mrb[0].mxu0
          %v768 = vadd.f32 0.0, %v767
          %v769 = vpop.f32.mrb[0].mxu0
          %770 = vdwg.mxu0
          %771 = vst [vmem:[%s289] sm:$0xff] %v693
          %772 = vst [vmem:[%s289 + $0x8] sm:$0xff] %v698
          %773 = vst [vmem:[%s289 + $0x10] sm:$0xff] %v703
          %774 = vst [vmem:[%s289 + $0x18] sm:$0xff] %v708
          %775 = vst [vmem:[%s289 + $0x20] sm:$0xff] %v713
          %776 = vst [vmem:[%s289 + $0x28] sm:$0xff] %v718
          %777 = vst [vmem:[%s289 + $0x30] sm:$0xff] %v723
          %778 = vst [vmem:[%s289 + $0x38] sm:$0xff] %v728
          %779 = vst [vmem:[%s289 + $0x40] sm:$0xff] %v733
          %780 = vst [vmem:[%s289 + $0x48] sm:$0xff] %v738
          %781 = vst [vmem:[%s289 + $0x50] sm:$0xff] %v743
          %782 = vst [vmem:[%s289 + $0x58] sm:$0xff] %v748
          %783 = vst [vmem:[%s289 + $0x60] sm:$0xff] %v753
          %784 = vst [vmem:[%s289 + $0x68] sm:$0xff] %v758
          %785 = vst [vmem:[%s289 + $0x70] sm:$0xff] %v763
          %786 = vst [vmem:[%s289 + $0x78] sm:$0xff] %v768
        $region81: #{hgnn_conv.1} parent=68 // pred_fallthru
          _
        %s787 = smul.u32 16, %s18
        %p788 = scmp.lt.s32.totalorder %s787, 31
        %s789 = scalar_select %p788, %s787, 31
        %s790 = smul.addr %s789, 8
        %s791 = scalar_lea.vmem %s3, %s790
        // Predicated region
        $region82: #{hgnn_conv.1} parent=68 // pred_check
          %p792 = pneg %p114
        $region83: #{hgnn_conv.1} parent=68 // pred_check_branch
          %794 = sbr.rel (%p792) target = $region85
        $region84: #{hgnn_conv.1} parent=68 // pred_region
          %s795 = smul.u32 16, %s18
        $region85: #{hgnn_conv.1} parent=68 // pred_fallthru
          _
      $region69: #{hgnn_conv.1} parent=5 // pred_fallthru
        _
      %p796 = scmp.le.s32.totalorder 2, %s9
      // Predicated region
      $region86: #{hgnn_conv.1} parent=5 // pred_check
        %p797 = pneg %p796
      $region87: #{hgnn_conv.1} parent=5 // pred_check_branch
        %799 = sbr.rel (%p797) target = $region89
      $region88: #{hgnn_conv.1} parent=5 // pred_region
        %s800 = ssub.s32 %s9, 2
        // Predicated region
        $region90: #{hgnn_conv.1} parent=88 // pred_check
          %p801 = pneg %p120
        $region91: #{hgnn_conv.1} parent=88 // pred_check_branch
          %803 = sbr.rel (%p801) target = $region93
        $region92: #{hgnn_conv.1} parent=88 // pred_region
          %s804 = smul.u32 16, %s20
          %p805 = scmp.lt.s32.totalorder %s804, 31
          %s806 = scalar_select %p805, %s804, 31
          %s807 = smul.addr %s806, 8
          %s808 = scalar_lea.vmem %s3, %s807
        $region93: #{hgnn_conv.1} parent=88 // pred_fallthru
          _
      $region89: #{hgnn_conv.1} parent=5 // pred_fallthru
        _
    $region6: #{hgnn_conv.1} parent=1 // loop_footer
      %s13 = sadd.s32 1, %s9
    $region7: #{hgnn_conv.1} parent=1 // loop_footer_branch
      %8 = sbr.rel target = $region3
    $region8: #{hgnn_conv.1} parent=1 // loop_exit
      _

</llo_original>
